<compile_context>
chip_gen: v7x
topology: tpu7x:2x2x1
jax: 0.10.0
libtpu: 0.0.40
codegen_flags: <defaults>
</compile_context>

<pallas_src>
import functools

import numpy as np
import jax
import jax.numpy as jnp
from jax import lax
from jax.scipy.special import logsumexp
from jax.experimental import pallas as pl
from jax.experimental.pallas import tpu as pltpu


def _round_up(x, m):
    return ((x + m - 1) // m) * m


# ----------------------------------------------------------------------------
# Code-space construction (pure NumPy glue, mirrors get_indexed_code_space)
# ----------------------------------------------------------------------------
def _int_to_base_left_padded(i, base, length):
    digits = np.zeros(length, dtype=np.int8)
    for p in range(length - 1, -1, -1):
        digits[p] = i % base
        i //= base
    return digits


def build_indexed_code_space(n_symbols, code_length, code_space_filter_func):
    n_all_codes = n_symbols ** code_length
    all_codes_al = np.zeros((n_all_codes, code_length), dtype=np.int8)
    for i_code in range(n_all_codes):
        all_codes_al[i_code, :] = _int_to_base_left_padded(i_code, n_symbols, code_length)
    all_codes_als = np.eye(n_symbols, dtype=np.int8)[all_codes_al, :]   # (A, L, S)
    passing_a = code_space_filter_func(all_codes_als, code_length)
    return all_codes_als[passing_a, ...]


def hamming_weight_filter(codes_als_np, code_length, min_w=2, max_w=None):
    """Example code_space_filter_func: keep codes whose symbol-1 count is in [min_w, max_w]."""
    if max_w is None:
        max_w = code_length - 2
    w = codes_als_np[..., 1].sum(axis=-1)
    return (w >= min_w) & (w <= max_w)


# ----------------------------------------------------------------------------
# Pallas kernel 1: one-body potential for ALL types over the full code space
#   one_body[t, a] = sum_d w_all[t, d] * codes[d, a]          (MXU, f32 acc)
# Grid tiles the code axis A (lane-dense output).
# ----------------------------------------------------------------------------
def _one_body_kernel(w_ref, codes_ref, out_ref):
    # w_ref: (T, D) bf16 ; codes_ref: (D, TILE_A) bf16 ; out_ref: (T, TILE_A) f32
    out_ref[...] = jnp.dot(w_ref[...], codes_ref[...],
                           preferred_element_type=jnp.float32)


def one_body_all_types(w_all_td, codes_da, tile_a):
    T, D = w_all_td.shape
    _, A_pad = codes_da.shape
    assert A_pad % tile_a == 0
    return pl.pallas_call(
        _one_body_kernel,
        grid=(A_pad // tile_a,),
        out_shape=jax.ShapeDtypeStruct((T, A_pad), jnp.float32),
        in_specs=[pl.BlockSpec((T, D), lambda i: (0, 0)),
                  pl.BlockSpec((D, tile_a), lambda i: (0, i))],
        out_specs=pl.BlockSpec((T, tile_a), lambda i: (0, i)),
        compiler_params=pltpu.CompilerParams(
            dimension_semantics=("parallel",)),
    )(w_all_td, codes_da)


# ----------------------------------------------------------------------------
# Pallas kernel 2: batched two-body interaction energy + hardcore clash count
#   overlap[r, k] = sum_d prev[r, d] * trunc[k, d]          r = b*T + t   (MXU)
#   energy        = exp(-gamma * (L - overlap))                          (EUP)
#   two[b, k]     = sum_r selw[b, r] * energy[r, k]         (block-diag matmul,
#   hard[b, k]    = sum_r selv[b, r] * clash[r, k]           weights folded in)
# Single invocation for the whole batch; K padded to 128 for lane-dense stores.
# ----------------------------------------------------------------------------
def _two_body_kernel(trunc_ref, prev_ref, sel_ref, two_ref, hard_ref,
                     *, gamma, code_length):
    trunc = trunc_ref[...]                               # (K_pad, D)  bf16
    prev = prev_ref[...]                                 # (B*T, D)    bf16
    overlap = lax.dot_general(prev, trunc, (((1,), (1,)), ((), ())),
                              preferred_element_type=jnp.float32)     # (B*T, K_pad)
    energy = jnp.exp(-gamma * (code_length - overlap))                # (B*T, K_pad)
    clash = (overlap > code_length - 0.5).astype(jnp.float32)         # (B*T, K_pad)
    selw = sel_ref[0]                                    # (B, B*T) f32  (weights folded)
    selv = sel_ref[1]                                    # (B, B*T) f32  (validity folded)
    two_ref[...] = jnp.dot(selw, energy, preferred_element_type=jnp.float32)
    hard_ref[...] = jnp.dot(selv, clash, preferred_element_type=jnp.float32)


def two_body_potential_batched(trunc_pad_kd, prev_flat_rd, sel_2br, gamma, code_length):
    K_pad, _ = trunc_pad_kd.shape
    B = sel_2br.shape[1]
    kernel = functools.partial(_two_body_kernel,
                               gamma=float(gamma), code_length=float(code_length))
    two, hard = pl.pallas_call(
        kernel,
        out_shape=(jax.ShapeDtypeStruct((B, K_pad), jnp.float32),
                   jax.ShapeDtypeStruct((B, K_pad), jnp.float32)),
        in_specs=[pl.BlockSpec(memory_space=pltpu.MemorySpace.VMEM)] * 3,
        out_specs=(pl.BlockSpec(memory_space=pltpu.MemorySpace.VMEM),
                   pl.BlockSpec(memory_space=pltpu.MemorySpace.VMEM)),
    )(trunc_pad_kd, prev_flat_rd, sel_2br)
    return two, hard


# ----------------------------------------------------------------------------
# Parameter initialization (deterministic, synthetic potentials)
# ----------------------------------------------------------------------------
def init_params(key, n_symbols, code_length, code_space_filter_func):
    codes_als_np = build_indexed_code_space(n_symbols, code_length, code_space_filter_func)
    codes_als = jnp.asarray(codes_als_np, dtype=jnp.float32)                  # (A, L, S)
    D = code_length * n_symbols
    w_onebody = 0.1 * jax.random.normal(key, (D, 3), dtype=jnp.float32)       # [w1 w2 w3]
    return {
        "n_symbols": n_symbols,
        "code_length": code_length,
        "codes_als": codes_als,
        "w_onebody": w_onebody,
        "gamma": 1.0,
    }


# ----------------------------------------------------------------------------
# Forward pass (mirrors MRFCodebookGenerator.forward)
# ----------------------------------------------------------------------------
def mrf_codebook_generator_forward(
    *, key, params, code_length, n_types, batch_size, pi_t, nu_tj,
    two_body_max_n_interactions, two_body_dropout_policy,
    top_proposals_per_column, random_proposals_per_column,
    disable_one_body=False, disable_two_body=False,
    enable_hardcore_two_body_potential=False,
    action_policy="sampled", action_policy_epsilon=0.2,
    one_body_strength_multiplier=1.0, two_body_strength_multiplier=1.0,
    top_k_noise_std=0.0, np_rng=None,
):
    assert action_policy in {"sampled", "greedy", "epsilon-greedy"}
    assert two_body_dropout_policy in {"earlier", "random"}
    del nu_tj  # source metadata unused by the synthetic potentials

    n_symbols = params["n_symbols"]
    codes_als = params["codes_als"]                       # (A, L, S) f32
    w_onebody = params["w_onebody"]                       # (L*S, 3) f32
    gamma = params["gamma"]

    pi_t = jnp.asarray(pi_t, dtype=jnp.float32)
    assert pi_t.shape == (n_types,)
    assert bool(jnp.all(pi_t[:-1] - pi_t[1:] >= 0.0))     # descending source distribution
    pi_cdf_t = jnp.cumsum(pi_t, axis=-1)

    A = codes_als.shape[0]
    D = code_length * n_symbols
    codes_2d = codes_als.reshape(A, D)

    top_p = min(top_proposals_per_column, A)
    rand_p = min(random_proposals_per_column, A)
    K = top_p + rand_p
    K_pad = _round_up(K, 128)                             # lane-dense candidate axis

    type_rank_t = jnp.arange(n_types, dtype=jnp.float32) / n_types
    sweep_order = np.arange(n_types)

    if np_rng is None:
        np_rng = np.random.default_rng(0)

    # ---------------- hoisted one-body precompute (single Pallas call) ----------------
    # Fold [pi, type_rank, pi_cdf] into the weights: W_eff[t, d] = sum_j scal[t, j] * W[d, j]
    scal_t3 = jnp.stack([pi_t, type_rank_t, pi_cdf_t], axis=-1)               # (T, 3)
    w_all_td = (scal_t3 @ w_onebody.T).astype(jnp.bfloat16)                   # (T, D) bf16

    # bf16 codes (one-hot values exact); stored transposed (D, A_pad) so the code axis
    # is the lane dimension of the one-body output.  bf16 on MXU is valid on all of
    # v5e/v6e/v7x (v7x has no integer MXU path, so we do not use int8 here).
    tile_a = min(_round_up(A, 128), 1024)                 # <=1024: tiny vs v7x 64 MiB VMEM
    A_pad = _round_up(A, tile_a)
    codes_pad_ad = jnp.zeros((A_pad, D), jnp.float32).at[:A].set(codes_2d)
    codes_da_bf16 = codes_pad_ad.T.astype(jnp.bfloat16)                       # (D, A_pad)
    codes_2d_bf16 = codes_2d.astype(jnp.bfloat16)                             # (A, D)

    one_body_ta = one_body_all_types(w_all_td, codes_da_bf16, tile_a)[:, :A]  # (T, A)

    c_btls = jnp.zeros((batch_size, n_types, code_length, n_symbols), dtype=jnp.float32)
    eye_b = jnp.eye(batch_size, dtype=jnp.float32)
    log_prob_cols = []

    for i_p, i_t in enumerate(sweep_order):
        key, k_noise, k_rand, k_samp, k_eps = jax.random.split(key, 5)

        one_body_a = one_body_ta[i_t]                                          # (A,)

        if top_k_noise_std > 0.0:
            noisy_one_body_a = one_body_a + top_k_noise_std * jnp.std(one_body_a, ddof=1) * \
                jax.random.normal(k_noise, one_body_a.shape, dtype=one_body_a.dtype)
        else:
            noisy_one_body_a = one_body_a

        # ---- proposal set: top-k by one-body + random proposals ----
        # TODO(synk): torch.unique yields a variable-length proposal set; here we keep a
        # fixed-size set and mask duplicates to -inf (same distribution over unique codes).
        top_idx = lax.top_k(-noisy_one_body_a, top_p)[1].astype(jnp.int32)
        rand_idx = jax.random.randint(k_rand, (rand_p,), 0, A, dtype=jnp.int32)
        cand = jnp.sort(jnp.concatenate([top_idx, rand_idx]))
        dup_k = jnp.concatenate([jnp.zeros((1,), dtype=bool), cand[1:] == cand[:-1]])
        trunc_codes_kls = codes_als[cand]                                      # (K, L, S) f32
        trunc_pad_kd = jnp.zeros((K_pad, D), jnp.bfloat16).at[:K].set(codes_2d_bf16[cand])

        if not disable_one_body:
            one_body_k = one_body_a[cand]
        else:
            one_body_k = jnp.zeros((K,), jnp.float32)

        # ---- two-body potential / hardcore clash against placed columns (Pallas) ----
        need_two_body_kernel = i_p > 0 and ((not disable_two_body)
                                            or enable_hardcore_two_body_potential)
        if need_two_body_kernel:
            if not disable_two_body:
                if two_body_max_n_interactions < n_types - 1:
                    if two_body_dropout_policy == "earlier":
                        interaction_indices = sweep_order[
                            max(0, i_p - two_body_max_n_interactions):i_p]
                    else:  # 'random' (torch uses np.random.permutation here as well)
                        interaction_indices = sweep_order[:i_p][np_rng.permutation(i_p)][
                            :min(i_p, two_body_max_n_interactions)]
                else:
                    interaction_indices = sweep_order[:i_p]
                n_interaction = len(interaction_indices)
                dropout_comp = i_p / n_interaction
                inter_mask = np.zeros((n_types,), np.float32)
                inter_mask[np.asarray(interaction_indices)] = 1.0
                # fold dropout compensation, pi_1 and pi_2 into per-column weights
                w_t = (dropout_comp * pi_t * pi_t[i_t] * jnp.asarray(inter_mask)
                       ).astype(jnp.float32)                                   # (T,)
            else:
                w_t = jnp.zeros((n_types,), jnp.float32)

            valid_mask = np.zeros((n_types,), np.float32)
            valid_mask[np.asarray(sweep_order[:i_p])] = 1.0
            valid_t = jnp.asarray(valid_mask)                                  # (T,)

            # block-diagonal selection matrices: weights / validity folded in
            selw = jnp.kron(eye_b, w_t[None, :])                               # (B, B*T)
            selv = jnp.kron(eye_b, valid_t[None, :])                           # (B, B*T)
            sel = jnp.stack([selw, selv], axis=0)                              # (2, B, B*T)

            prev_flat = c_btls.reshape(batch_size * n_types, D).astype(jnp.bfloat16)
            two_pad, hard_pad = two_body_potential_batched(
                trunc_pad_kd, prev_flat, sel, gamma, code_length)
            two_body_bk = two_pad[:, :K]
            hard_bk = hard_pad[:, :K]
            if disable_two_body:
                two_body_bk = jnp.zeros((batch_size, K), jnp.float32)
        else:
            two_body_bk = jnp.zeros((batch_size, K), jnp.float32)
            hard_bk = jnp.zeros((batch_size, K), jnp.float32)

        unnorm_bk = -(one_body_strength_multiplier * jnp.broadcast_to(one_body_k, (batch_size, K))
                      + two_body_strength_multiplier * two_body_bk)
        if i_p > 0 and enable_hardcore_two_body_potential:
            unnorm_bk = jnp.where(hard_bk > 0.0, -jnp.inf, unnorm_bk)
        unnorm_bk = jnp.where(dup_k[None, :], -jnp.inf, unnorm_bk)

        # guarded normalization: if every candidate in a row is masked to -inf, fall back
        # to a uniform distribution instead of producing NaNs (degenerate case only).
        lse_b1 = logsumexp(unnorm_bk, axis=-1, keepdims=True)
        finite_b1 = jnp.isfinite(lse_b1)
        log_prob_bk = jnp.where(finite_b1,
                                unnorm_bk - jnp.where(finite_b1, lse_b1, 0.0),
                                -jnp.log(float(K)))

        # ---- action selection ----
        if action_policy == "sampled":
            c_b = jax.random.categorical(k_samp, log_prob_bk, axis=-1)
        elif action_policy == "greedy":
            c_b = jnp.argmax(log_prob_bk, axis=-1)
        else:  # epsilon-greedy
            c_sampled_b = jax.random.categorical(k_samp, log_prob_bk, axis=-1)
            c_greedy_b = jnp.argmax(log_prob_bk, axis=-1)
            u_b = jax.random.uniform(k_eps, (batch_size,))
            c_b = jnp.where(u_b > action_policy_epsilon, c_greedy_b, c_sampled_b)

        c_btls = c_btls.at[:, i_t, :, :].set(trunc_codes_kls[c_b])
        log_prob_cols.append(log_prob_bk[jnp.arange(batch_size), c_b])

    log_prob_b = jnp.stack(log_prob_cols, axis=-1).mean(-1)
    return {"codebook_btls": c_btls, "log_prob_b": log_prob_b}


# ----------------------------------------------------------------------------
if __name__ == "__main__":
    key = jax.random.PRNGKey(0)
    key, k_params, k_fwd = jax.random.split(key, 3)

    n_symbols = 2
    code_length = 8
    n_types = 6
    batch_size = 2

    params = init_params(
        k_params, n_symbols, code_length,
        functools.partial(hamming_weight_filter, min_w=2, max_w=4))

    # descending (abundant-first) source distribution
    pi_t = jnp.exp(-0.5 * jnp.arange(n_types, dtype=jnp.float32))
    pi_t = pi_t / pi_t.sum()

    out = mrf_codebook_generator_forward(
        key=k_fwd, params=params,
        code_length=code_length, n_types=n_types, batch_size=batch_size,
        pi_t=pi_t, nu_tj=None,
        two_body_max_n_interactions=n_types - 1,
        two_body_dropout_policy="earlier",
        top_proposals_per_column=12,
        random_proposals_per_column=4,
        enable_hardcore_two_body_potential=True,
        action_policy="sampled",
        one_body_strength_multiplier=1.0,
        two_body_strength_multiplier=1.0,
        top_k_noise_std=0.0,
    )

    jax.block_until_ready(out["codebook_btls"])
    jax.block_until_ready(out["log_prob_b"])

    cb = np.asarray(out["codebook_btls"])
    lp = np.asarray(out["log_prob_b"])
    assert cb.shape == (batch_size, n_types, code_length, n_symbols)
    assert lp.shape == (batch_size,)
    assert np.allclose(cb.sum(-1), 1.0)        # every codebook row is one-hot
    assert np.all(np.isfinite(lp))
    print("KERNEL_OK")
</pallas_src>

<mosaic_0001>
module attributes {stable_mosaic.version = 11 : i64} {
  func.func @_one_body_kernel(%arg0: i32, %arg1: memref<6x16xbf16, #tpu.memory_space<vmem>>, %arg2: memref<16x256xbf16, #tpu.memory_space<vmem>>, %arg3: memref<6x256xf32, #tpu.memory_space<vmem>>) attributes {dimension_semantics = [#tpu.dimension_semantics<parallel>], iteration_bounds = array<i64: 1>, scalar_prefetch = 0 : i64, scratch_operands = 0 : i64, tpu.core_type = #tpu.core_type<tc>, window_params = [{pipeline_mode = #tpu.pipeline_mode<synchronous>, transform_indices = @transform_0, window_bounds = array<i64: 6, 16>}, {transform_indices = @transform_1, window_bounds = array<i64: 16, 256>}, {transform_indices = @transform_2, window_bounds = array<i64: 6, 256>}]} {
    %c0 = arith.constant 0 : index
    %c0_0 = arith.constant 0 : index
    %0 = vector.load %arg1[%c0, %c0_0] : memref<6x16xbf16, #tpu.memory_space<vmem>>, vector<6x16xbf16>
    %c0_1 = arith.constant 0 : index
    %c0_2 = arith.constant 0 : index
    %1 = vector.load %arg2[%c0_1, %c0_2] : memref<16x256xbf16, #tpu.memory_space<vmem>>, vector<16x256xbf16>
    %cst = arith.constant dense<0.000000e+00> : vector<6x256xf32>
    %2 = tpu.matmul %0, %1, %cst {dimension_numbers = #tpu.dot_dimension_numbers<[1], [0], [0], [1], [0, 0, 1, 1], [], []>} : vector<6x16xbf16>, vector<16x256xbf16>, vector<6x256xf32> -> vector<6x256xf32>
    %c0_3 = arith.constant 0 : index
    %c0_4 = arith.constant 0 : index
    %3 = vector.load %arg3[%c0_3, %c0_4] : memref<6x256xf32, #tpu.memory_space<vmem>>, vector<6x256xf32>
    tpu.vector_store %arg3[%c0_3, %c0_4], %2 {strides = array<i32>} : memref<6x256xf32, #tpu.memory_space<vmem>>, vector<6x256xf32>,
    return
  }
  func.func @transform_0(%arg0: i32) -> (i32, i32) {
    %c0_i32 = arith.constant 0 : i32
    %c0_i32_0 = arith.constant 0 : i32
    %c0_i32_1 = arith.constant 0 : i32
    return %c0_i32, %c0_i32_0 : i32, i32
  }
  func.func @transform_1(%arg0: i32) -> (i32, i32) {
    %c0_i32 = arith.constant 0 : i32
    %c0_i32_0 = arith.constant 0 : i32
    return %c0_i32, %arg0 : i32, i32
  }
  func.func @transform_2(%arg0: i32) -> (i32, i32) {
    %c0_i32 = arith.constant 0 : i32
    %c0_i32_0 = arith.constant 0 : i32
    return %c0_i32, %arg0 : i32, i32
  }
}

</mosaic_0001>

<llo_original>
// kernel: tpu_custom_call.1
$region0: #{tpu_custom_call.1}
  #allocation0 [shape = 'u32[]', space=smem, size = 0x4, offset = 0x4, fixed_abs, tag = 'smem constant byte address 0x4 - core index']
  #allocation1 [shape = 'u32[144,128]{1,0:T(1,128)}', space=vmem, size = 0x12000, scoped, tag = 'internal scratch']
  %s0 = inlined_call_operand.hbm [shape: bf16[6,16], index: 0, kind: input, shape index: {}]
  %s1 = inlined_call_operand.hbm [shape: bf16[16,256], index: 1, kind: input, shape index: {}]
  %s2 = inlined_call_operand.hbm [shape: f32[6,256], index: 2, kind: output, shape index: {}]
  %s3 = sld [smem:[#allocation0]]
  $region26: #{tpu_custom_call.1} parent=0
    _
  %s5 = ssub.s32 1, %s3
  %s6 = scalar_select 0, %s5, %s3
  $region1: #{tpu_custom_call.1} parent=0
    #allocation2 [shape = 'u8[2048]{0}', space=vmem, size = 0x800, scoped, tag = 'input window, operand 0, single buffered']
    #allocation3 [shape = 's32[1]{0}', space=sflag, size = 0x4, scoped, tag = 'scoped memory for tpu_custom_call.1']
    #allocation4 [shape = 's32[1]{0}', space=sflag, size = 0x4, scoped, tag = 'scoped memory for tpu_custom_call.1']
    #allocation5 [shape = 'u8[8192]{0}', space=vmem, size = 0x2000, scoped, tag = 'input window, operand 1, single buffered']
    #allocation6 [shape = 's32[1]{0}', space=sflag, size = 0x4, scoped, tag = 'scoped memory for tpu_custom_call.1']
    #allocation7 [shape = 'u8[8192]{0}', space=vmem, size = 0x2000, scoped, tag = 'output window, operand 0, single buffered']
    %7 = vsyncpa [#allocation3], 0
    %8 = vsyncpa [#allocation6], 0
    %9 = vsyncpa [#allocation4], 0
    // Predicated region
    $region2: #{tpu_custom_call.1} parent=1 // pred_check
      _
    $region3: #{tpu_custom_call.1} parent=1 // pred_check_branch
      %11 = sbr.rel (0) target = $region5
    $region4: #{tpu_custom_call.1} parent=1 // pred_region
      %s13 = ssub.s32 64, 64
      %14 = vsyncadd [#allocation3], %s13
      %s16 = sshll.u32 [#allocation2], 4
      %s17 = int_to_ptr.vmem [resolvable:$true] %s16
      %19 = dma.hbm_to_vmem [thread:$0]  %s0, 64, %s17, [#allocation3]
    $region5: #{tpu_custom_call.1} parent=1 // pred_fallthru
      _
    // Predicated region
    $region6: #{tpu_custom_call.1} parent=1 // pred_check
      _
    $region7: #{tpu_custom_call.1} parent=1 // pred_check_branch
      %21 = sbr.rel (0) target = $region9
    $region8: #{tpu_custom_call.1} parent=1 // pred_region
      %s23 = ssub.s32 256, 256
      %24 = vsyncadd [#allocation6], %s23
      %s25 = sshll.u32 [#allocation5], 4
      %s26 = int_to_ptr.vmem [resolvable:$true] %s25
      %31 = dma.hbm_to_vmem [thread:$0]  %s1, 256, %s26, [#allocation6], 128, 128, 8
    $region9: #{tpu_custom_call.1} parent=1 // pred_fallthru
      _
    // Predicated region
    $region10: #{tpu_custom_call.1} parent=1 // pred_check
      _
    $region11: #{tpu_custom_call.1} parent=1 // pred_check_branch
      %33 = sbr.rel (0) target = $region13
    $region12: #{tpu_custom_call.1} parent=1 // pred_region
      %34 = dma.done [#allocation3], 64
    $region13: #{tpu_custom_call.1} parent=1 // pred_fallthru
      _
    // Predicated region
    $region14: #{tpu_custom_call.1} parent=1 // pred_check
      _
    $region15: #{tpu_custom_call.1} parent=1 // pred_check_branch
      %36 = sbr.rel (0) target = $region17
    $region16: #{tpu_custom_call.1} parent=1 // pred_region
      %37 = dma.done [#allocation6], 256
    $region17: #{tpu_custom_call.1} parent=1 // pred_fallthru
      _
    %v39 = vld [vmem:[#allocation2] sm:$0x7]
    %v40 = vld [vmem:[#allocation5] sm:$0xff]
    %v41 = vld [vmem:[#allocation5 + $0x8] sm:$0xff]
    %v44 = vunpack.c.l.b16 %v40
    %v45 = vunpack.c.h.b16 %v40
    %v46 = vunpack.c.l.b16 %v41
    %v47 = vunpack.c.h.b16 %v41
    %v48 = vpack.c.b16 %v46, %v44
    %v49 = vpack.c.b16 %v47, %v45
    %vm52 = vcmask 130048
    %v54 = vsel %vm52, %v39, 0
    %56 = vmatprep.subr.bf16.mxu0 %v49
    %57 = vmatpush1.bf16.msra.mxu0 %v48
    %58 = vmatprep.subr.bf16.mxu0 0
    %59 = vmatpush1.bf16.msra.mxu0 0
    %60 = vmatprep.subr.bf16.mxu0 0
    %61 = vmatpush1.bf16.msra.mxu0 0
    %62 = vmatprep.subr.bf16.mxu0 0
    %63 = vmatpush1.bf16.msra.mxu0 0
    %64 = vmatprep.subr.bf16.mxu0 0
    %65 = vmatpush1.bf16.msra.mxu0 0
    %66 = vmatprep.subr.bf16.mxu0 0
    %67 = vmatpush1.bf16.msra.mxu0 0
    %68 = vmatprep.subr.bf16.mxu0 0
    %69 = vmatpush1.bf16.msra.mxu0 0
    %70 = vmatprep.subr.bf16.mxu0 0
    %71 = vmatpush1.bf16.msra.mxu0 0
    %72 = vmatprep.subr.bf16.mxu0 0
    %73 = vmatpush1.bf16.msra.mxu0 0
    %74 = vmatprep.subr.bf16.mxu0 0
    %75 = vmatpush1.bf16.msra.mxu0 0
    %76 = vmatprep.subr.bf16.mxu0 0
    %77 = vmatpush1.bf16.msra.mxu0 0
    %78 = vmatprep.subr.bf16.mxu0 0
    %79 = vmatpush1.bf16.msra.mxu0 0
    %80 = vmatprep.subr.bf16.mxu0 0
    %81 = vmatpush1.bf16.msra.mxu0 0
    %82 = vmatprep.subr.bf16.mxu0 0
    %83 = vmatpush1.bf16.msra.mxu0 0
    %84 = vmatprep.subr.bf16.mxu0 0
    %85 = vmatpush1.bf16.msra.mxu0 0
    %86 = vmatprep.subr.bf16.mxu0 0
    %87 = vmatpush1.bf16.msra.mxu0 0
    %88 = vmatprep.mubr.bf16.mxu0 0
    %89 = vmatmul.mubr.bf16.gmra.mrb[0].mxu0 %v54
    %v90 = vpop.f32.mrb[0].mxu0
    %v91 = vadd.f32 0.0, %v90
    %v92 = vpop.f32.mrb[0].mxu0
    %v93 = vadd.f32 0.0, %v92
    %v94 = vpop.f32.mrb[0].mxu0
    %v95 = vpop.f32.mrb[0].mxu0
    %96 = vdwg.mxu0
    %97 = vst [vmem:[#allocation7] sm:$0x3f] %v91
    %98 = vst [vmem:[#allocation7 + $0x8] sm:$0x3f] %v93
    // Predicated region
    $region18: #{tpu_custom_call.1} parent=1 // pred_check
      _
    $region19: #{tpu_custom_call.1} parent=1 // pred_check_branch
      %100 = sbr.rel (0) target = $region21
    $region20: #{tpu_custom_call.1} parent=1 // pred_region
      %s102 = ssub.s32 256, 256
      %103 = vsyncadd [#allocation4], %s102
      %s105 = sshll.u32 [#allocation7], 4
      %s106 = int_to_ptr.vmem [resolvable:$true] %s105
      %108 = dma.vmem_to_hbm [thread:$0]  %s106, 256, %s2, [#allocation4]
    $region21: #{tpu_custom_call.1} parent=1 // pred_fallthru
      _
    // Predicated region
    $region22: #{tpu_custom_call.1} parent=1 // pred_check
      _
    $region23: #{tpu_custom_call.1} parent=1 // pred_check_branch
      %110 = sbr.rel (0) target = $region25
    $region24: #{tpu_custom_call.1} parent=1 // pred_region
      %111 = dma.done [#allocation4], 256
    $region25: #{tpu_custom_call.1} parent=1 // pred_fallthru
      _
    %112 = vsyncpa [#allocation3], 1
    %113 = vsyncpa [#allocation6], 1
    %114 = vsyncpa [#allocation4], 1

</llo_original>
